<compile_context>
chip_gen: v6e
topology: v6e:2x2x1
jax: 0.10.0
libtpu: 0.0.40
codegen_flags: <defaults>
</compile_context>

<pallas_src>
import numpy as np
import jax
import jax.numpy as jnp
from jax.experimental import pallas as pl
from jax.experimental.pallas import tpu as pltpu


def _round_up(x, m):
    return ((x + m - 1) // m) * m


def _cdiv(a, b):
    return (a + b - 1) // b


# ----------------------------------------------------------------------------
# Deterministic buffer construction (glue, plain numpy — mirrors __init__)
# ----------------------------------------------------------------------------
def make_buffers(resolution, patch_size, sigma):
    height = resolution
    width = resolution * 2
    patch_cnt = height // patch_size
    C = patch_cnt * (2 * patch_cnt)

    # 'cartesian' heatmap_geometry basis: a Gaussian bump centered at each
    # patch center (analytic Gaussian stands in for scipy.gaussian_filter on a
    # delta image — deterministic, synthetic weights).
    ys = np.arange(height)[:, None]
    xs = np.arange(width)[None, :]
    basis_list = []
    for j in range(patch_cnt):
        for i in range(patch_cnt * 2):
            cy = j * patch_size + patch_size // 2
            cx = i * patch_size + patch_size // 2
            g = np.exp(-((ys - cy) ** 2 + (xs - cx) ** 2) / (2.0 * sigma * sigma))
            g = g / (2.0 * np.pi * sigma * sigma)
            basis_list.append(g)
    sph_basis = np.asarray(basis_list, dtype=np.float32)          # [C, H, W]

    # spatial_weight buffer (cosine latitude weighting), flattened.
    spatial_weight = np.zeros((patch_cnt, patch_cnt * 2), dtype=np.float32)
    for j in range(patch_cnt):
        for i in range(patch_cnt * 2):
            spatial_weight[j, i] = np.cos(
                (2 * j + 1 - patch_cnt) * np.pi / (patch_cnt * 2))
    spatial_weight = spatial_weight.flatten()                      # [C]

    # cartesian adjacency matrix (buffer only; not used by compute_heatmap).
    grid = (patch_cnt, 2 * patch_cnt)
    adj = []
    for k in range(grid[0] * grid[1]):
        m = np.zeros(grid)
        h_idx, w_idx = k // grid[1], k % grid[1]
        m[h_idx, (w_idx + 1) % grid[1]] = 1.0
        m[h_idx, w_idx - 1] = 1.0
        if h_idx > 0:
            m[h_idx - 1, w_idx] = 1.0
        if h_idx < grid[0] - 1:
            m[h_idx + 1, w_idx] = 1.0
        m /= np.sum(m)
        adj.append(m.flatten())
    adjacency_matrix = np.asarray(adj, dtype=np.float32).T         # [C, C]

    return sph_basis, spatial_weight, adjacency_matrix, C, height, width


# ----------------------------------------------------------------------------
# Kernels: heatmap = normalize((salmap**2) @ basis_flat)
# ----------------------------------------------------------------------------
def _heatmap_kernel_inplace(sal_ref, basis_ref, out_ref):
    # f32 output: use out_ref itself as the matmul staging buffer so there is
    # no separate, unbudgeted [TN, HW_pad] VMEM temporary.
    sal = sal_ref[...]
    out_ref[...] = jnp.dot((sal * sal).astype(basis_ref.dtype), basis_ref[...],
                           preferred_element_type=jnp.float32)
    hm = out_ref[...]
    hm_min = jnp.min(hm, axis=-1, keepdims=True)
    rng = jnp.max(hm, axis=-1, keepdims=True) - hm_min            # max of shifted map
    # Exact reciprocal: rng is only [TN, 1], so the divide is essentially free.
    # Degenerate rows (rng == 0, e.g. padding) emit 0 instead of NaN.
    inv = jnp.where(rng > 0.0, 1.0, 0.0) / jnp.where(rng > 0.0, rng, 1.0)
    out_ref[...] = (hm - hm_min) * inv


def _heatmap_kernel_scratch(sal_ref, basis_ref, out_ref, hm_ref):
    # Narrow (bf16) output: stage the f32 MXU result in an explicitly budgeted
    # VMEM scratch, normalize in f32, cast once at the final (lane-dense) store.
    sal = sal_ref[...]
    hm_ref[...] = jnp.dot((sal * sal).astype(basis_ref.dtype), basis_ref[...],
                          preferred_element_type=jnp.float32)
    hm = hm_ref[...]
    hm_min = jnp.min(hm, axis=-1, keepdims=True)
    rng = jnp.max(hm, axis=-1, keepdims=True) - hm_min
    inv = jnp.where(rng > 0.0, 1.0, 0.0) / jnp.where(rng > 0.0, rng, 1.0)
    out_ref[...] = ((hm - hm_min) * inv).astype(out_ref.dtype)


def _build_heatmap_call(n_pad, c, hw_pad, tn, *, out_dtype, single_buffer_basis,
                        vmem_limit):
    if single_buffer_basis:
        # Constant index_map -> fetched once; single buffer halves its VMEM use.
        basis_spec = pl.BlockSpec((c, hw_pad), lambda i: (0, 0),
                                  pipeline_mode=pl.Buffered(1))
    else:
        basis_spec = pl.BlockSpec((c, hw_pad), lambda i: (0, 0))

    out_is_f32 = np.dtype(out_dtype) == np.dtype(np.float32)
    if out_is_f32:
        kernel = _heatmap_kernel_inplace
        scratch = ()
    else:
        kernel = _heatmap_kernel_scratch
        scratch = (pltpu.VMEM((tn, hw_pad), jnp.float32),)

    return pl.pallas_call(
        kernel,
        out_shape=jax.ShapeDtypeStruct((n_pad, hw_pad), out_dtype),
        grid_spec=pltpu.PrefetchScalarGridSpec(
            num_scalar_prefetch=0,
            grid=(n_pad // tn,),
            in_specs=[
                pl.BlockSpec((tn, c), lambda i: (i, 0)),
                basis_spec,
            ],
            out_specs=pl.BlockSpec((tn, hw_pad), lambda i: (i, 0)),
            scratch_shapes=scratch,
        ),
        compiler_params=pltpu.CompilerParams(
            dimension_semantics=("parallel",),
            vmem_limit_bytes=int(vmem_limit),
        ),
    )


# ----------------------------------------------------------------------------
# One-time capability probes (kept out of the jit-able hot path)
# ----------------------------------------------------------------------------
_SINGLE_BUFFER_OK = None


def _single_buffer_basis_supported():
    """Decide once whether pl.Buffered(1) on a constant-index operand lowers."""
    global _SINGLE_BUFFER_OK
    if _SINGLE_BUFFER_OK is None:
        try:
            call = _build_heatmap_call(32, 8, 128, 16, out_dtype=jnp.float32,
                                       single_buffer_basis=True,
                                       vmem_limit=32 << 20)
            jax.block_until_ready(call(jnp.zeros((32, 8), jnp.float32),
                                       jnp.zeros((8, 128), jnp.float32)))
            _SINGLE_BUFFER_OK = True
        except Exception:
            _SINGLE_BUFFER_OK = False
    return _SINGLE_BUFFER_OK


def _vmem_capacity_bytes():
    try:
        return int(pltpu.get_tpu_info().vmem_capacity_bytes)
    except Exception:
        return 64 << 20   # conservative fallback: v7x per-TensorCore VMEM


# ----------------------------------------------------------------------------
# Factory: mirrors BaseDecoder.__init__ (basis prep hoisted, done once)
# ----------------------------------------------------------------------------
def make_heatmap_fn(sph_basis, *, out_dtype=jnp.bfloat16, bf16_matmul=False,
                    tn_cap=1024):
    """Return a jit-compiled salmap[..., C] -> heatmap[..., H, W] function.

    out_dtype:   bf16 (default) halves the dominant HBM write traffic of this
                 HBM-write-bound kernel; pass jnp.float32 for the exact module
                 output dtype / precision.
    bf16_matmul: cast the MXU operands to bf16 (f32 accumulate).  Mainly a
                 v5e lever (slow f32 MXU passes); off by default.
    """
    sph_basis = np.asarray(sph_basis, dtype=np.float32)
    C, H, W = sph_basis.shape
    HW = H * W
    HW_pad = _round_up(HW, 128)                     # lane-dense, unmasked stores

    basis_dtype = jnp.bfloat16 if bf16_matmul else jnp.float32
    basis_np = sph_basis.reshape(C, HW)
    if HW_pad != HW:
        # Edge-replicated lanes reproduce a real column's heatmap value, so the
        # per-row min/max need no in-kernel masking; padded lanes are sliced off.
        basis_np = np.pad(basis_np, ((0, 0), (0, HW_pad - HW)), mode="edge")
    basis_flat = jax.device_put(jnp.asarray(basis_np, dtype=basis_dtype))

    out_dtype = np.dtype(out_dtype)
    out_bytes = out_dtype.itemsize
    basis_bytes = np.dtype(basis_dtype).itemsize
    out_is_f32 = out_dtype == np.dtype(np.float32)
    row_align = 8 if out_bytes >= 4 else 16          # bf16 out tiles as (16,128)

    single_buffer = _single_buffer_basis_supported()
    basis_bufs = 1 if single_buffer else 2

    # VMEM budget: resident basis + double-buffered sal/out tiles + the f32
    # staging scratch (when output is narrower than f32), with headroom left
    # for the compiler.  Capacity-driven so v5e/v6e (128 MiB) get 512-1024-row
    # tiles while v7x (64 MiB) stays safely under its limit.
    vmem_cap = _vmem_capacity_bytes()
    usable = max(24 << 20, vmem_cap - (16 << 20))
    fixed = basis_bufs * C * HW_pad * basis_bytes
    per_row = 2 * C * 4 + 2 * HW_pad * out_bytes + (0 if out_is_f32 else HW_pad * 4)
    tn_fit = max(row_align, ((usable - fixed) // per_row) // row_align * row_align)
    tn_max = int(min(tn_cap, tn_fit))

    def heatmap_fn(salmap):
        salmap = jnp.asarray(salmap)
        if salmap.shape[-1] != C:
            raise ValueError(f"expected last dim {C}, got {salmap.shape}")
        lead = salmap.shape[:-1]
        N = int(np.prod(lead)) if lead else 1

        # Tile rows so padding waste is minimal (TN ~ divides N) and there are
        # >=2 grid steps when rows allow: lets the 'parallel' axis shard across
        # both v7x TensorCores, costs nothing on 1-TC chips.
        n_rows = _round_up(N, row_align)
        min_steps = 2 if n_rows >= 2 * row_align else 1
        steps = max(min_steps, _cdiv(n_rows, tn_max))
        tn = _round_up(_cdiv(n_rows, steps), row_align)
        steps = _cdiv(n_rows, tn)
        n_pad = steps * tn

        needed = fixed + tn * per_row
        vmem_limit = min(vmem_cap, max(32 << 20, needed + (4 << 20)))

        sal_flat = salmap.reshape(N, C).astype(jnp.float32)
        if n_pad != N:
            sal_flat = jnp.pad(sal_flat, ((0, n_pad - N), (0, 0)))

        call = _build_heatmap_call(n_pad, C, HW_pad, tn, out_dtype=out_dtype,
                                   single_buffer_basis=single_buffer,
                                   vmem_limit=vmem_limit)
        out_flat = call(sal_flat, basis_flat)
        # No-op slices when n_pad == N and HW_pad == HW (the common case).
        return out_flat[:N, :HW].reshape(*lead, H, W)

    return jax.jit(heatmap_fn)


# ----------------------------------------------------------------------------
# Pure-JAX reference (mirrors the PyTorch compute_heatmap exactly)
# ----------------------------------------------------------------------------
def compute_heatmap_ref(salmap, sph_basis):
    hm = jnp.einsum('...c,chw->...hw', salmap ** 2, sph_basis)
    hm = hm - jnp.min(hm, axis=(-2, -1), keepdims=True)
    hm = hm / jnp.max(hm, axis=(-2, -1), keepdims=True)
    return hm


if __name__ == "__main__":
    key = jax.random.PRNGKey(0)
    k1, k2, k3 = jax.random.split(key, 3)

    # config A: resolution=8, patch_size=2, sigma=2 -> C=32, H=8, W=16 (HW=128)
    basis_a_np, _, _, C_a, H_a, W_a = make_buffers(8, 2, 2.0)
    basis_a = jnp.asarray(basis_a_np)

    # 1) f32 output path (exact module dtype), single grid step, no padding.
    fn_f32 = make_heatmap_fn(basis_a, out_dtype=jnp.float32)
    sal_a = jax.random.normal(k1, (2, 4, C_a), dtype=jnp.float32)
    out_f32 = jax.block_until_ready(fn_f32(sal_a))
    ref_a = compute_heatmap_ref(sal_a, basis_a)
    assert out_f32.shape == (2, 4, H_a, W_a)
    assert np.allclose(np.asarray(out_f32), np.asarray(ref_a), atol=5e-3, rtol=5e-3)

    # 2) bf16 output path (default, halves HBM write traffic), multi-step grid.
    fn_bf16 = make_heatmap_fn(basis_a)
    sal_b = jax.random.normal(k2, (4, 40, C_a), dtype=jnp.float32)
    out_bf16 = jax.block_until_ready(fn_bf16(sal_b))
    ref_b = compute_heatmap_ref(sal_b, basis_a)
    assert out_bf16.dtype == jnp.bfloat16
    assert out_bf16.shape == (4, 40, H_a, W_a)
    assert np.allclose(np.asarray(out_bf16.astype(jnp.float32)), np.asarray(ref_b),
                       atol=2e-2, rtol=2e-2)

    # 3) lane-padded config: resolution=12 -> HW=288 padded to 384 with
    #    edge-replicated basis columns (exercises the mask-free padding path).
    basis_c_np, _, _, C_c, H_c, W_c = make_buffers(12, 2, 2.0)
    basis_c = jnp.asarray(basis_c_np)
    fn_pad = make_heatmap_fn(basis_c, out_dtype=jnp.float32)
    sal_c = jax.random.normal(k3, (2, 3, C_c), dtype=jnp.float32)
    out_pad = jax.block_until_ready(fn_pad(sal_c))
    ref_c = compute_heatmap_ref(sal_c, basis_c)
    assert out_pad.shape == (2, 3, H_c, W_c)
    assert np.allclose(np.asarray(out_pad), np.asarray(ref_c), atol=1e-2, rtol=1e-2)

    print("KERNEL_OK")
</pallas_src>

<mosaic_0001>
module attributes {stable_mosaic.version = 11 : i64} {
  func.func @_heatmap_kernel_inplace(%arg0: i32, %arg1: memref<16x8xf32, #tpu.memory_space<vmem>>, %arg2: memref<8x128xf32, #tpu.memory_space<vmem>>, %arg3: memref<16x128xf32, #tpu.memory_space<vmem>>) attributes {dimension_semantics = [#tpu.dimension_semantics<parallel>], iteration_bounds = array<i64: 2>, scalar_prefetch = 0 : i64, scratch_operands = 0 : i64, tpu.core_type = #tpu.core_type<tc>, window_params = [{transform_indices = @transform_0, window_bounds = array<i64: 16, 8>}, {pipeline_mode = #tpu.pipeline_mode<synchronous>, transform_indices = @transform_1, window_bounds = array<i64: 8, 128>}, {transform_indices = @transform_2, window_bounds = array<i64: 16, 128>}]} {
    %c0 = arith.constant 0 : index
    %c0_0 = arith.constant 0 : index
    %0 = vector.load %arg1[%c0, %c0_0] : memref<16x8xf32, #tpu.memory_space<vmem>>, vector<16x8xf32>
    %1 = arith.mulf %0, %0 : vector<16x8xf32>
    %c0_1 = arith.constant 0 : index
    %c0_2 = arith.constant 0 : index
    %2 = vector.load %arg2[%c0_1, %c0_2] : memref<8x128xf32, #tpu.memory_space<vmem>>, vector<8x128xf32>
    %cst = arith.constant dense<0.000000e+00> : vector<16x128xf32>
    %3 = tpu.matmul %1, %2, %cst {dimension_numbers = #tpu.dot_dimension_numbers<[1], [0], [0], [1], [0, 0, 1, 1], [], []>} : vector<16x8xf32>, vector<8x128xf32>, vector<16x128xf32> -> vector<16x128xf32>
    %c0_3 = arith.constant 0 : index
    %c0_4 = arith.constant 0 : index
    %4 = vector.load %arg3[%c0_3, %c0_4] : memref<16x128xf32, #tpu.memory_space<vmem>>, vector<16x128xf32>
    tpu.vector_store %arg3[%c0_3, %c0_4], %3 {strides = array<i32>} : memref<16x128xf32, #tpu.memory_space<vmem>>, vector<16x128xf32>,
    %c0_5 = arith.constant 0 : index
    %c0_6 = arith.constant 0 : index
    %5 = vector.load %arg3[%c0_5, %c0_6] : memref<16x128xf32, #tpu.memory_space<vmem>>, vector<16x128xf32>
    %cst_7 = arith.constant dense<0x7F800000> : vector<16xf32>
    %6 = vector.multi_reduction <minimumf>, %5, %cst_7 [1] : vector<16x128xf32> to vector<16xf32>
    %7 = vector.shape_cast %6 : vector<16xf32> to vector<16x1xf32>
    %cst_8 = arith.constant dense<0xFF800000> : vector<16xf32>
    %8 = vector.multi_reduction <maximumf>, %5, %cst_8 [1] : vector<16x128xf32> to vector<16xf32>
    %9 = vector.shape_cast %8 : vector<16xf32> to vector<16x1xf32>
    %10 = arith.subf %9, %7 : vector<16x1xf32>
    %cst_9 = arith.constant 0.000000e+00 : f32
    %11 = vector.broadcast %cst_9 : f32 to vector<16x1xf32>
    %12 = arith.cmpf ogt, %10, %11 : vector<16x1xf32>
    %cst_10 = arith.constant 1.000000e+00 : f32
    %cst_11 = arith.constant 0.000000e+00 : f32
    %13 = vector.broadcast %cst_10 : f32 to vector<16x1xf32>
    %14 = vector.broadcast %cst_11 : f32 to vector<16x1xf32>
    %15 = arith.select %12, %13, %14 : vector<16x1xi1>, vector<16x1xf32>
    %cst_12 = arith.constant 0.000000e+00 : f32
    %16 = vector.broadcast %cst_12 : f32 to vector<16x1xf32>
    %17 = arith.cmpf ogt, %10, %16 : vector<16x1xf32>
    %cst_13 = arith.constant 1.000000e+00 : f32
    %18 = vector.broadcast %cst_13 : f32 to vector<16x1xf32>
    %19 = arith.select %17, %10, %18 : vector<16x1xi1>, vector<16x1xf32>
    %20 = arith.divf %15, %19 : vector<16x1xf32>
    %21 = vector.broadcast %7 : vector<16x1xf32> to vector<16x128xf32>
    %22 = arith.subf %5, %21 : vector<16x128xf32>
    %23 = vector.broadcast %20 : vector<16x1xf32> to vector<16x128xf32>
    %24 = arith.mulf %22, %23 : vector<16x128xf32>
    %c0_14 = arith.constant 0 : index
    %c0_15 = arith.constant 0 : index
    %25 = vector.load %arg3[%c0_14, %c0_15] : memref<16x128xf32, #tpu.memory_space<vmem>>, vector<16x128xf32>
    tpu.vector_store %arg3[%c0_14, %c0_15], %24 {strides = array<i32>} : memref<16x128xf32, #tpu.memory_space<vmem>>, vector<16x128xf32>,
    return
  }
  func.func @transform_0(%arg0: i32) -> (i32, i32) {
    %c0_i32 = arith.constant 0 : i32
    %c0_i32_0 = arith.constant 0 : i32
    return %arg0, %c0_i32 : i32, i32
  }
  func.func @transform_1(%arg0: i32) -> (i32, i32) {
    %c0_i32 = arith.constant 0 : i32
    %c0_i32_0 = arith.constant 0 : i32
    %c0_i32_1 = arith.constant 0 : i32
    return %c0_i32, %c0_i32_0 : i32, i32
  }
  func.func @transform_2(%arg0: i32) -> (i32, i32) {
    %c0_i32 = arith.constant 0 : i32
    %c0_i32_0 = arith.constant 0 : i32
    return %arg0, %c0_i32 : i32, i32
  }
}

module attributes {stable_mosaic.version = 11 : i64} {
  func.func @_heatmap_kernel_inplace(%arg0: i32, %arg1: memref<8x32xf32, #tpu.memory_space<vmem>>, %arg2: memref<32x128xf32, #tpu.memory_space<vmem>>, %arg3: memref<8x128xf32, #tpu.memory_space<vmem>>) attributes {dimension_semantics = [#tpu.dimension_semantics<parallel>], iteration_bounds = array<i64: 1>, scalar_prefetch = 0 : i64, scratch_operands = 0 : i64, tpu.core_type = #tpu.core_type<tc>, window_params = [{transform_indices = @transform_0, window_bounds = array<i64: 8, 32>}, {pipeline_mode = #tpu.pipeline_mode<synchronous>, transform_indices = @transform_1, window_bounds = array<i64: 32, 128>}, {transform_indices = @transform_2, window_bounds = array<i64: 8, 128>}]} {
    %c0 = arith.constant 0 : index
    %c0_0 = arith.constant 0 : index
    %0 = vector.load %arg1[%c0, %c0_0] : memref<8x32xf32, #tpu.memory_space<vmem>>, vector<8x32xf32>
    %1 = arith.mulf %0, %0 : vector<8x32xf32>
    %c0_1 = arith.constant 0 : index
    %c0_2 = arith.constant 0 : index
    %2 = vector.load %arg2[%c0_1, %c0_2] : memref<32x128xf32, #tpu.memory_space<vmem>>, vector<32x128xf32>
    %cst = arith.constant dense<0.000000e+00> : vector<8x128xf32>
    %3 = tpu.matmul %1, %2, %cst {dimension_numbers = #tpu.dot_dimension_numbers<[1], [0], [0], [1], [0, 0, 1, 1], [], []>} : vector<8x32xf32>, vector<32x128xf32>, vector<8x128xf32> -> vector<8x128xf32>
    %c0_3 = arith.constant 0 : index
    %c0_4 = arith.constant 0 : index
    %4 = vector.load %arg3[%c0_3, %c0_4] : memref<8x128xf32, #tpu.memory_space<vmem>>, vector<8x128xf32>
    tpu.vector_store %arg3[%c0_3, %c0_4], %3 {strides = array<i32>} : memref<8x128xf32, #tpu.memory_space<vmem>>, vector<8x128xf32>,
    %c0_5 = arith.constant 0 : index
    %c0_6 = arith.constant 0 : index
    %5 = vector.load %arg3[%c0_5, %c0_6] : memref<8x128xf32, #tpu.memory_space<vmem>>, vector<8x128xf32>
    %cst_7 = arith.constant dense<0x7F800000> : vector<8xf32>
    %6 = vector.multi_reduction <minimumf>, %5, %cst_7 [1] : vector<8x128xf32> to vector<8xf32>
    %7 = vector.shape_cast %6 : vector<8xf32> to vector<8x1xf32>
    %cst_8 = arith.constant dense<0xFF800000> : vector<8xf32>
    %8 = vector.multi_reduction <maximumf>, %5, %cst_8 [1] : vector<8x128xf32> to vector<8xf32>
    %9 = vector.shape_cast %8 : vector<8xf32> to vector<8x1xf32>
    %10 = arith.subf %9, %7 : vector<8x1xf32>
    %cst_9 = arith.constant 0.000000e+00 : f32
    %11 = vector.broadcast %cst_9 : f32 to vector<8x1xf32>
    %12 = arith.cmpf ogt, %10, %11 : vector<8x1xf32>
    %cst_10 = arith.constant 1.000000e+00 : f32
    %cst_11 = arith.constant 0.000000e+00 : f32
    %13 = vector.broadcast %cst_10 : f32 to vector<8x1xf32>
    %14 = vector.broadcast %cst_11 : f32 to vector<8x1xf32>
    %15 = arith.select %12, %13, %14 : vector<8x1xi1>, vector<8x1xf32>
    %cst_12 = arith.constant 0.000000e+00 : f32
    %16 = vector.broadcast %cst_12 : f32 to vector<8x1xf32>
    %17 = arith.cmpf ogt, %10, %16 : vector<8x1xf32>
    %cst_13 = arith.constant 1.000000e+00 : f32
    %18 = vector.broadcast %cst_13 : f32 to vector<8x1xf32>
    %19 = arith.select %17, %10, %18 : vector<8x1xi1>, vector<8x1xf32>
    %20 = arith.divf %15, %19 : vector<8x1xf32>
    %21 = vector.broadcast %7 : vector<8x1xf32> to vector<8x128xf32>
    %22 = arith.subf %5, %21 : vector<8x128xf32>
    %23 = vector.broadcast %20 : vector<8x1xf32> to vector<8x128xf32>
    %24 = arith.mulf %22, %23 : vector<8x128xf32>
    %c0_14 = arith.constant 0 : index
    %c0_15 = arith.constant 0 : index
    %25 = vector.load %arg3[%c0_14, %c0_15] : memref<8x128xf32, #tpu.memory_space<vmem>>, vector<8x128xf32>
    tpu.vector_store %arg3[%c0_14, %c0_15], %24 {strides = array<i32>} : memref<8x128xf32, #tpu.memory_space<vmem>>, vector<8x128xf32>,
    return
  }
  func.func @transform_0(%arg0: i32) -> (i32, i32) {
    %c0_i32 = arith.constant 0 : i32
    %c0_i32_0 = arith.constant 0 : i32
    return %arg0, %c0_i32 : i32, i32
  }
  func.func @transform_1(%arg0: i32) -> (i32, i32) {
    %c0_i32 = arith.constant 0 : i32
    %c0_i32_0 = arith.constant 0 : i32
    %c0_i32_1 = arith.constant 0 : i32
    return %c0_i32, %c0_i32_0 : i32, i32
  }
  func.func @transform_2(%arg0: i32) -> (i32, i32) {
    %c0_i32 = arith.constant 0 : i32
    %c0_i32_0 = arith.constant 0 : i32
    return %arg0, %c0_i32 : i32, i32
  }
}

</mosaic_0001>

<llo_original>
// kernel: tpu_custom_call.1
$region0: #{tpu_custom_call.1}
  #allocation0 [shape = 'u32[]', space=smem, size = 0x4, offset = 0x4, fixed_abs, tag = 'smem constant byte address 0x4 - core index']
  #allocation1 [shape = 'u32[144,128]{1,0:T(1,128)}', space=vmem, size = 0x12000, scoped, tag = 'internal scratch']
  %s0 = inlined_call_operand.vmem [shape: f32[32,8], index: 0, kind: input, shape index: {}]
  %s1 = inlined_call_operand.vmem [shape: f32[8,128], index: 1, kind: input, shape index: {}]
  %s2 = inlined_call_operand.hbm [shape: f32[32,128], index: 2, kind: output, shape index: {}]
  %s3 = sld [smem:[#allocation0]]
  $region41: #{tpu_custom_call.1} parent=0
    _
  %s5 = ssub.s32 1, %s3
  %s6 = scalar_select 0, %s5, %s3
  $region1: #{tpu_custom_call.1} parent=0
    #allocation2 [shape = 'u8[16384]{0}', space=vmem, size = 0x4000, scoped, tag = 'output window, operand 0']
    #allocation3 [shape = 's32[2]{0}', space=sflag, size = 0x8, scoped, tag = 'scoped memory for tpu_custom_call.1']
    %7 = vsyncpa [#allocation3], 0
    %s8 = scalar_lea.sflag [#allocation3], 1
    %9 = vsyncpa %s8, 0
    loop: start=0, step=1, limit=4
    $region2: #{tpu_custom_call.1} parent=1 // loop_pre_header
      _
    $region3: #{tpu_custom_call.1} parent=1 // loop_header
      %s11 = sphi 0, %s15
      %p12 = scmp.ge.s32.totalorder %s11, 4
      %s21 = sphi 0, %s23
      %s24 = sphi 0, %s21
      %s25 = sphi 0, %s24
      %s41 = sphi 0, %s25
      %s45 = sphi 0, %s45
      %s47 = sphi 0, %s45
      %s48 = sphi 0, %s47
      %s62 = sphi 0, %s48
      %s68 = sphi 0, %s70
      %s71 = sphi 0, %s68
      %s72 = sphi 0, %s71
      %s88 = sphi 0, %s72
    $region4: #{tpu_custom_call.1} parent=1 // loop_header_branch
      %14 = sbr.rel (%p12) target = $region8
    $region5: #{tpu_custom_call.1} parent=1 // loop_body
      %s16 = ssub.s32 %s11, 1
      %s17 = ssub.s32 %s11, 2
      %s18 = sadd.s32 %s11, 1
      %s19 = ssub.s32 %s11, %s18
      %p20 = scmp.eq.s32.totalorder %s19, 0
      %s22 = sadd.s32 %s21, 1
      %s23 = scalar_select %p20, %s21, %s22
      %p26 = pneg %p20
      %p27 = scmp.eq.s32.totalorder %s11, 1
      %p28 = por %p26, %p27
      %p29 = scmp.ne.s32.totalorder %s21, %s24
      %p30 = scmp.eq.s32.totalorder %s11, 0
      %p31 = por %p29, %p30
      %p32 = scmp.ne.s32.totalorder %s21, %s24
      %p33 = scmp.eq.s32.totalorder %s16, 1
      %p34 = por %p32, %p33
      %p35 = scmp.ne.s32.totalorder %s24, %s25
      %p36 = scmp.eq.s32.totalorder %s16, 0
      %p37 = por %p35, %p36
      %p38 = scmp.ne.s32.totalorder %s24, %s25
      %p39 = scmp.eq.s32.totalorder %s17, 1
      %p40 = por %p38, %p39
      %p42 = scmp.ne.s32.totalorder %s25, %s41
      %p43 = scmp.eq.s32.totalorder %s17, 0
      %p44 = por %p42, %p43
      %s46 = sadd.s32 %s45, 1
      %p49 = scmp.eq.s32.totalorder %s11, 1
      %p50 = scmp.ne.s32.totalorder %s45, %s47
      %p51 = scmp.eq.s32.totalorder %s11, 0
      %p52 = por %p50, %p51
      %p53 = scmp.ne.s32.totalorder %s45, %s47
      %p54 = scmp.eq.s32.totalorder %s16, 1
      %p55 = por %p53, %p54
      %p56 = scmp.ne.s32.totalorder %s47, %s48
      %p57 = scmp.eq.s32.totalorder %s16, 0
      %p58 = por %p56, %p57
      %p59 = scmp.ne.s32.totalorder %s47, %s48
      %p60 = scmp.eq.s32.totalorder %s17, 1
      %p61 = por %p59, %p60
      %p63 = scmp.ne.s32.totalorder %s48, %s62
      %p64 = scmp.eq.s32.totalorder %s17, 0
      %p65 = por %p63, %p64
      %s66 = ssub.s32 %s11, %s18
      %p67 = scmp.eq.s32.totalorder %s66, 0
      %s69 = sadd.s32 %s68, 1
      %s70 = scalar_select %p67, %s68, %s69
      %p73 = pneg %p67
      %p74 = scmp.eq.s32.totalorder %s11, 1
      %p75 = por %p73, %p74
      %p76 = scmp.ne.s32.totalorder %s68, %s71
      %p77 = scmp.eq.s32.totalorder %s11, 0
      %p78 = por %p76, %p77
      %p79 = scmp.ne.s32.totalorder %s68, %s71
      %p80 = scmp.eq.s32.totalorder %s16, 1
      %p81 = por %p79, %p80
      %p82 = scmp.ne.s32.totalorder %s71, %s72
      %p83 = scmp.eq.s32.totalorder %s16, 0
      %p84 = por %p82, %p83
      %p85 = scmp.ne.s32.totalorder %s71, %s72
      %p86 = scmp.eq.s32.totalorder %s17, 1
      %p87 = por %p85, %p86
      %p89 = scmp.ne.s32.totalorder %s72, %s88
      %p90 = scmp.eq.s32.totalorder %s17, 0
      %p91 = por %p89, %p90
      %p92 = scmp.le.s32.totalorder 1, %s11
      %p93 = scmp.lt.s32.totalorder %s11, 3
      %p94 = pnand %p92, %p93
      %p95 = pneg %p94
      // Predicated region
      $region9: #{tpu_custom_call.1} parent=5 // pred_check
        _
      $region10: #{tpu_custom_call.1} parent=5 // pred_check_branch
        %97 = sbr.rel (%p94) target = $region12
      $region11: #{tpu_custom_call.1} parent=5 // pred_region
        %s98 = ssub.s32 %s11, 1
        // Predicated region
        $region13: #{tpu_custom_call.1} parent=11 // pred_check
          %p99 = pneg %p58
        $region14: #{tpu_custom_call.1} parent=11 // pred_check_branch
          %101 = sbr.rel (%p99) target = $region16
        $region15: #{tpu_custom_call.1} parent=11 // pred_region
          _
        $region16: #{tpu_custom_call.1} parent=11 // pred_fallthru
          _
      $region12: #{tpu_custom_call.1} parent=5 // pred_fallthru
        _
      %p102 = scmp.lt.s32.totalorder %s11, 2
      // Predicated region
      $region17: #{tpu_custom_call.1} parent=5 // pred_check
        %p103 = pneg %p102
      $region18: #{tpu_custom_call.1} parent=5 // pred_check_branch
        %105 = sbr.rel (%p103) target = $region20
      $region19: #{tpu_custom_call.1} parent=5 // pred_region
        // Predicated region
        $region21: #{tpu_custom_call.1} parent=19 // pred_check
          %p106 = pneg %p31
        $region22: #{tpu_custom_call.1} parent=19 // pred_check_branch
          %108 = sbr.rel (%p106) target = $region24
        $region23: #{tpu_custom_call.1} parent=19 // pred_region
          %s109 = smul.u32 2, %s11
          %p110 = scmp.lt.s32.totalorder %s109, 3
          %s111 = scalar_select %p110, %s109, 3
          %s112 = smul.addr %s111, 8
          %s113 = scalar_lea.vmem %s0, %s112
          %s114 = smul.u32 2, %s11
        $region24: #{tpu_custom_call.1} parent=19 // pred_fallthru
          _
      $region20: #{tpu_custom_call.1} parent=5 // pred_fallthru
        _
      %p115 = scmp.le.s32.totalorder 1, %s11
      %p116 = scmp.lt.s32.totalorder %s11, 3
      %p117 = pnand %p115, %p116
      %p118 = pneg %p117
      // Predicated region
      $region25: #{tpu_custom_call.1} parent=5 // pred_check
        _
      $region26: #{tpu_custom_call.1} parent=5 // pred_check_branch
        %120 = sbr.rel (%p117) target = $region28
      $region27: #{tpu_custom_call.1} parent=5 // pred_region
        %s121 = ssub.s32 %s11, 1
        %s122 = smul.u32 2, %s16
        %p123 = scmp.lt.s32.totalorder %s122, 3
        %s124 = scalar_select %p123, %s122, 3
        %s125 = smul.addr %s124, 8
        %s126 = scalar_lea.vmem %s0, %s125
        %p127 = pneg %p37
        %p128 = pneg %p34
        %p129 = pneg %p58
        %p130 = pneg %p55
        %p131 = pneg %p84
        %p132 = pneg %p81
        %s133 = sand.u32 %s71, 1
        %s134 = scalar_lea.sflag [#allocation3], %s133
        %s135 = sand.u32 %s71, 1
        %s136 = smul.addr %s135, 16
        %s137 = scalar_lea.vmem [#allocation2], %s136
        %s138 = smul.u32 2, %s16
        %p139 = scmp.lt.s32.totalorder %s138, 3
        %s140 = scalar_select %p139, %s138, 3
        %s141 = smul.addr %s140, 8
        %s142 = scalar_lea.vmem %s0, %s141
        %s143 = smul.u32 2, %s16
        %s144 = smul.u32 2, %s16
        %v145 = vld [vmem:[%s142] sm:$0xff]
        %v146 = vld [vmem:[%s142 + $0x8] sm:$0xff]
        %v147 = vmul.f32 %v145, %v145
        %v148 = vmul.f32 %v146, %v146
        %v149 = vld [vmem:[%s1] sm:$0xff]
        %vm150 = vcmask 64512
        %v152 = vsel %vm150, %v147, 0
        %v155 = vsel %vm150, %v148, 0
        %157 = vmatprep.subr.mxu0 0.0
        %158 = vmatpush1.msra.mxu0 0.0
        %159 = vmatprep.subr.mxu0 0.0
        %160 = vmatpush1.msra.mxu0 0.0
        %161 = vmatprep.subr.mxu0 0.0
        %162 = vmatpush1.msra.mxu0 0.0
        %163 = vmatprep.subr.mxu0 0.0
        %164 = vmatpush1.msra.mxu0 0.0
        %165 = vmatprep.subr.mxu0 0.0
        %166 = vmatpush1.msra.mxu0 0.0
        %167 = vmatprep.subr.mxu0 0.0
        %168 = vmatpush1.msra.mxu0 0.0
        %169 = vmatprep.subr.mxu0 0.0
        %170 = vmatpush1.msra.mxu0 0.0
        %171 = vmatprep.subr.mxu0 0.0
        %172 = vmatpush1.msra.mxu0 0.0
        %173 = vmatprep.subr.mxu0 0.0
        %174 = vmatpush1.msra.mxu0 0.0
        %175 = vmatprep.subr.mxu0 0.0
        %176 = vmatpush1.msra.mxu0 0.0
        %177 = vmatprep.subr.mxu0 0.0
        %178 = vmatpush1.msra.mxu0 0.0
        %179 = vmatprep.subr.mxu0 0.0
        %180 = vmatpush1.msra.mxu0 0.0
        %181 = vmatprep.subr.mxu0 0.0
        %182 = vmatpush1.msra.mxu0 0.0
        %183 = vmatprep.subr.mxu0 0.0
        %184 = vmatpush1.msra.mxu0 0.0
        %185 = vmatprep.subr.mxu0 0.0
        %186 = vmatpush1.msra.mxu0 0.0
        %187 = vmatprep.subr.mxu0 0.0
        %188 = vmatpush1.msra.mxu0 %v149
        %189 = vmatprep.subr.mxu0 0.0
        %190 = vmatpush2.msra.mxu0 0.0
        %191 = vmatprep.subr.mxu0 0.0
        %192 = vmatpush2.msra.mxu0 0.0
        %193 = vmatprep.subr.mxu0 0.0
        %194 = vmatpush2.msra.mxu0 0.0
        %195 = vmatprep.subr.mxu0 0.0
        %196 = vmatpush2.msra.mxu0 0.0
        %197 = vmatprep.subr.mxu0 0.0
        %198 = vmatpush2.msra.mxu0 0.0
        %199 = vmatprep.subr.mxu0 0.0
        %200 = vmatpush2.msra.mxu0 0.0
        %201 = vmatprep.subr.mxu0 0.0
        %202 = vmatpush2.msra.mxu0 0.0
        %203 = vmatprep.subr.mxu0 0.0
        %204 = vmatpush2.msra.mxu0 0.0
        %205 = vmatprep.subr.mxu0 0.0
        %206 = vmatpush2.msra.mxu0 0.0
        %207 = vmatprep.subr.mxu0 0.0
        %208 = vmatpush2.msra.mxu0 0.0
        %209 = vmatprep.subr.mxu0 0.0
        %210 = vmatpush2.msra.mxu0 0.0
        %211 = vmatprep.subr.mxu0 0.0
        %212 = vmatpush2.msra.mxu0 0.0
        %213 = vmatprep.subr.mxu0 0.0
        %214 = vmatpush2.msra.mxu0 0.0
        %215 = vmatprep.subr.mxu0 0.0
        %216 = vmatpush2.msra.mxu0 0.0
        %217 = vmatprep.subr.mxu0 0.0
        %218 = vmatpush2.msra.mxu0 0.0
        %219 = vmatprep.subr.mxu0 0.0
        %220 = vmatpush2.msra.mxu0 0.0
        %221 = vmatprep.mubr.f32.mxu0 0.0
        %222 = vmatmul.mubr.f32.gmra.mxu0 %v152
        %v223 = vpop.f32.mrf.mxu0
        %v224 = vadd.f32 0.0, %v223
        %v225 = vpop.f32.mrf.mxu0
        %226 = vmatprep.mubr.f32.mxu0 0.0
        %227 = vmatmul.mubr.f32.gmra.mxu0 %v155
        %v228 = vpop.f32.mrf.mxu0
        %v229 = vadd.f32 0.0, %v228
        %v230 = vpop.f32.mrf.mxu0
        %231 = vdwg.mxu0
        %232 = vst [vmem:[%s137] sm:$0xff] %v224
        %233 = vst [vmem:[%s137 + $0x8] sm:$0xff] %v229
        %v234 = vld [vmem:[%s137] sm:$0xff]
        %v235 = vld [vmem:[%s137 + $0x8] sm:$0xff]
        %236 = vmin.xlane.f32.xlu0 %v234
        %v237 = vpop.xlane.xlu0 %236
        %238 = vmin.xlane.f32.xlu0 %v235
        %v239 = vpop.xlane.xlu0 %238
        %240 = vmax.xlane.f32.xlu0 %v234
        %v241 = vpop.xlane.xlu0 %240
        %242 = vmax.xlane.f32.xlu0 %v235
        %v243 = vpop.xlane.xlu0 %242
        %v244 = vsub.f32 %v241, %v237
        %v245 = vsub.f32 %v243, %v239
        %vm246 = vcmp.gt.f32.partialorder %v244, 0.0
        %vm247 = vcmp.gt.f32.partialorder %v245, 0.0
        %v248 = vsel %vm246, 1.0, 0.0
        %v249 = vsel %vm247, 1.0, 0.0
        %v250 = vsel %vm246, %v244, 1.0
        %v251 = vsel %vm247, %v245, 1.0
        %v252 = vrcp.pop %v250
        %v253 = vmul.f32 %v248, %v252
        %v254 = vrcp.pop %v251
        %v255 = vmul.f32 %v249, %v254
        %v256 = vsub.f32 %v234, %v237
        %v257 = vsub.f32 %v235, %v239
        %v258 = vmul.f32 %v256, %v253
        %v259 = vmul.f32 %v257, %v255
        %260 = vst [vmem:[%s137] sm:$0xff] %v258
        %261 = vst [vmem:[%s137 + $0x8] sm:$0xff] %v259
        %s262 = sand.u32 %s71, 1
        %s263 = scalar_lea.sflag [#allocation3], %s262
        %s264 = sand.u32 %s71, 1
        %s265 = smul.addr %s264, 16
        %s266 = scalar_lea.vmem [#allocation2], %s265
        // Predicated region
        $region29: #{tpu_custom_call.1} parent=27 // pred_check
          %p267 = pneg %p81
        $region30: #{tpu_custom_call.1} parent=27 // pred_check_branch
          %269 = sbr.rel (%p267) target = $region32
        $region31: #{tpu_custom_call.1} parent=27 // pred_region
          %s270 = smul.u32 2, %s16
          %s272 = ssub.s32 256, 256
          %273 = vsyncadd %s263, %s272
          %s274 = smul.addr %s270, 128
          %s275 = scalar_lea.hbm %s2, %s274
          %s276 = sshll.u32 %s266, 4
          %s277 = int_to_ptr.vmem [resolvable:$true] %s276
          %282 = dma.vmem_to_hbm [thread:$0]  %s277, 256, %s275, %s263, 128, 128, 8
        $region32: #{tpu_custom_call.1} parent=27 // pred_fallthru
          _
      $region28: #{tpu_custom_call.1} parent=5 // pred_fallthru
        _
      %p283 = scmp.le.s32.totalorder 2, %s11
      // Predicated region
      $region33: #{tpu_custom_call.1} parent=5 // pred_check
        %p284 = pneg %p283
      $region34: #{tpu_custom_call.1} parent=5 // pred_check_branch
        %286 = sbr.rel (%p284) target = $region36
      $region35: #{tpu_custom_call.1} parent=5 // pred_region
        %s287 = ssub.s32 %s11, 2
        // Predicated region
        $region37: #{tpu_custom_call.1} parent=35 // pred_check
          %p288 = pneg %p87
        $region38: #{tpu_custom_call.1} parent=35 // pred_check_branch
          %290 = sbr.rel (%p288) target = $region40
        $region39: #{tpu_custom_call.1} parent=35 // pred_region
          %s291 = sand.u32 %s72, 1
          %s292 = scalar_lea.sflag [#allocation3], %s291
          %s293 = sand.u32 %s72, 1
          %s294 = smul.addr %s293, 16
          %s295 = scalar_lea.vmem [#allocation2], %s294
          %296 = dma.done %s292, 256
        $region40: #{tpu_custom_call.1} parent=35 // pred_fallthru
          _
      $region36: #{tpu_custom_call.1} parent=5 // pred_fallthru
        _
    $region6: #{tpu_custom_call.1} parent=1 // loop_footer
      %s15 = sadd.s32 1, %s11
    $region7: #{tpu_custom_call.1} parent=1 // loop_footer_branch
      %10 = sbr.rel target = $region3
    $region8: #{tpu_custom_call.1} parent=1 // loop_exit
      _
    %297 = vsyncpa [#allocation3], 1
    %s298 = scalar_lea.sflag [#allocation3], 1
    %299 = vsyncpa %s298, 1

// kernel: heatmap_fn.1
$region0: #{heatmap_fn.1}
  #allocation0 [shape = 'u32[]', space=smem, size = 0x4, offset = 0x4, fixed_abs, tag = 'smem constant byte address 0x4 - core index']
  #allocation1 [shape = 'u32[144,128]{1,0:T(1,128)}', space=vmem, size = 0x12000, scoped, tag = 'internal scratch']
  %s0 = inlined_call_operand.hbm [shape: f32[8,32], index: 0, kind: input, shape index: {}]
  %s1 = inlined_call_operand.hbm [shape: f32[32,128], index: 1, kind: input, shape index: {}]
  %s2 = inlined_call_operand.vmem [shape: f32[8,128], index: 2, kind: output, shape index: {}]
  %s3 = sld [smem:[#allocation0]]
  $region26: #{heatmap_fn.1} parent=0
    _
  %s5 = ssub.s32 1, %s3
  %s6 = scalar_select 0, %s5, %s3
  $region1: #{heatmap_fn.1} parent=0
    #allocation2 [shape = 'u8[4096]{0}', space=vmem, size = 0x1000, scoped, tag = 'input window, operand 0, single buffered']
    #allocation3 [shape = 's32[1]{0}', space=sflag, size = 0x4, scoped, tag = 'scoped memory for heatmap_fn.1']
    #allocation4 [shape = 'u8[16384]{0}', space=vmem, size = 0x4000, scoped, tag = 'input window, operand 1, single buffered']
    #allocation5 [shape = 's32[1]{0}', space=sflag, size = 0x4, scoped, tag = 'scoped memory for heatmap_fn.1']
    %7 = vsyncpa [#allocation3], 0
    %8 = vsyncpa [#allocation5], 0
    // Predicated region
    $region2: #{heatmap_fn.1} parent=1 // pred_check
      _
    $region3: #{heatmap_fn.1} parent=1 // pred_check_branch
      %10 = sbr.rel (0) target = $region5
    $region4: #{heatmap_fn.1} parent=1 // pred_region
      %s12 = ssub.s32 128, 128
      %13 = vsyncadd [#allocation3], %s12
      %s15 = sshll.u32 [#allocation2], 4
      %s16 = int_to_ptr.vmem [resolvable:$true] %s15
      %18 = dma.hbm_to_vmem [thread:$0]  %s0, 128, %s16, [#allocation3]
    $region5: #{heatmap_fn.1} parent=1 // pred_fallthru
      _
    // Predicated region
    $region6: #{heatmap_fn.1} parent=1 // pred_check
      _
    $region7: #{heatmap_fn.1} parent=1 // pred_check_branch
      %20 = sbr.rel (0) target = $region9
    $region8: #{heatmap_fn.1} parent=1 // pred_region
      %s22 = ssub.s32 512, 512
      %23 = vsyncadd [#allocation5], %s22
      %s24 = sshll.u32 [#allocation4], 4
      %s25 = int_to_ptr.vmem [resolvable:$true] %s24
      %30 = dma.hbm_to_vmem [thread:$0]  %s1, 512, %s25, [#allocation5], 128, 128, 8
    $region9: #{heatmap_fn.1} parent=1 // pred_fallthru
      _
    // Predicated region
    $region10: #{heatmap_fn.1} parent=1 // pred_check
      _
    $region11: #{heatmap_fn.1} parent=1 // pred_check_branch
      %32 = sbr.rel (0) target = $region13
    $region12: #{heatmap_fn.1} parent=1 // pred_region
      %33 = dma.done [#allocation3], 128
    $region13: #{heatmap_fn.1} parent=1 // pred_fallthru
      _
    // Predicated region
    $region14: #{heatmap_fn.1} parent=1 // pred_check
      _
    $region15: #{heatmap_fn.1} parent=1 // pred_check_branch
      %35 = sbr.rel (0) target = $region17
    $region16: #{heatmap_fn.1} parent=1 // pred_region
      %36 = dma.done [#allocation5], 512
    $region17: #{heatmap_fn.1} parent=1 // pred_fallthru
      _
    %v37 = vld [vmem:[#allocation2] sm:$0xff]
    %v38 = vmul.f32 %v37, %v37
    %v39 = vld [vmem:[#allocation4] sm:$0xff]
    %v40 = vld [vmem:[#allocation4 + $0x8] sm:$0xff]
    %v41 = vld [vmem:[#allocation4 + $0x10] sm:$0xff]
    %v42 = vld [vmem:[#allocation4 + $0x18] sm:$0xff]
    %vm43 = vcmask 261120
    %v45 = vsel %vm43, %v38, 0
    %47 = vmatprep.subr.mxu0 0.0
    %48 = vmatpush1.msra.mxu0 0.0
    %49 = vmatprep.subr.mxu0 0.0
    %50 = vmatpush1.msra.mxu0 0.0
    %51 = vmatprep.subr.mxu0 0.0
    %52 = vmatpush1.msra.mxu0 0.0
    %53 = vmatprep.subr.mxu0 0.0
    %54 = vmatpush1.msra.mxu0 0.0
    %55 = vmatprep.subr.mxu0 0.0
    %56 = vmatpush1.msra.mxu0 0.0
    %57 = vmatprep.subr.mxu0 0.0
    %58 = vmatpush1.msra.mxu0 0.0
    %59 = vmatprep.subr.mxu0 0.0
    %60 = vmatpush1.msra.mxu0 0.0
    %61 = vmatprep.subr.mxu0 0.0
    %62 = vmatpush1.msra.mxu0 0.0
    %63 = vmatprep.subr.mxu0 0.0
    %64 = vmatpush1.msra.mxu0 0.0
    %65 = vmatprep.subr.mxu0 0.0
    %66 = vmatpush1.msra.mxu0 0.0
    %67 = vmatprep.subr.mxu0 0.0
    %68 = vmatpush1.msra.mxu0 0.0
    %69 = vmatprep.subr.mxu0 0.0
    %70 = vmatpush1.msra.mxu0 0.0
    %71 = vmatprep.subr.mxu0 0.0
    %72 = vmatpush1.msra.mxu0 %v42
    %73 = vmatprep.subr.mxu0 0.0
    %74 = vmatpush1.msra.mxu0 %v41
    %75 = vmatprep.subr.mxu0 0.0
    %76 = vmatpush1.msra.mxu0 %v40
    %77 = vmatprep.subr.mxu0 0.0
    %78 = vmatpush1.msra.mxu0 %v39
    %79 = vmatprep.subr.mxu0 0.0
    %80 = vmatpush2.msra.mxu0 0.0
    %81 = vmatprep.subr.mxu0 0.0
    %82 = vmatpush2.msra.mxu0 0.0
    %83 = vmatprep.subr.mxu0 0.0
    %84 = vmatpush2.msra.mxu0 0.0
    %85 = vmatprep.subr.mxu0 0.0
    %86 = vmatpush2.msra.mxu0 0.0
    %87 = vmatprep.subr.mxu0 0.0
    %88 = vmatpush2.msra.mxu0 0.0
    %89 = vmatprep.subr.mxu0 0.0
    %90 = vmatpush2.msra.mxu0 0.0
    %91 = vmatprep.subr.mxu0 0.0
    %92 = vmatpush2.msra.mxu0 0.0
    %93 = vmatprep.subr.mxu0 0.0
    %94 = vmatpush2.msra.mxu0 0.0
    %95 = vmatprep.subr.mxu0 0.0
    %96 = vmatpush2.msra.mxu0 0.0
    %97 = vmatprep.subr.mxu0 0.0
    %98 = vmatpush2.msra.mxu0 0.0
    %99 = vmatprep.subr.mxu0 0.0
    %100 = vmatpush2.msra.mxu0 0.0
    %101 = vmatprep.subr.mxu0 0.0
    %102 = vmatpush2.msra.mxu0 0.0
    %103 = vmatprep.subr.mxu0 0.0
    %104 = vmatpush2.msra.mxu0 0.0
    %105 = vmatprep.subr.mxu0 0.0
    %106 = vmatpush2.msra.mxu0 0.0
    %107 = vmatprep.subr.mxu0 0.0
    %108 = vmatpush2.msra.mxu0 0.0
    %109 = vmatprep.subr.mxu0 0.0
    %110 = vmatpush2.msra.mxu0 0.0
    %111 = vmatprep.mubr.f32.mxu0 0.0
    %112 = vmatmul.mubr.f32.gmra.mxu0 %v45
    %v113 = vpop.f32.mrf.mxu0
    %v114 = vadd.f32 0.0, %v113
    %v115 = vpop.f32.mrf.mxu0
    %116 = vdwg.mxu0
    %117 = vst [vmem:[%s2] sm:$0xff] %v114
    %v118 = vld [vmem:[%s2] sm:$0xff]
    %119 = vmin.xlane.f32.xlu0 %v118
    %v120 = vpop.xlane.xlu0 %119
    %121 = vmax.xlane.f32.xlu0 %v118
    %v122 = vpop.xlane.xlu0 %121
    %v123 = vsub.f32 %v122, %v120
    %vm124 = vcmp.gt.f32.partialorder %v123, 0.0
    %v125 = vsel %vm124, 1.0, 0.0
    %v126 = vsel %vm124, %v123, 1.0
    %v127 = vrcp.pop %v126
    %v128 = vmul.f32 %v125, %v127
    %v129 = vsub.f32 %v118, %v120
    %v130 = vmul.f32 %v129, %v128
    %131 = vst [vmem:[%s2] sm:$0xff] %v130
    // Predicated region
    $region18: #{heatmap_fn.1} parent=1 // pred_check
      _
    $region19: #{heatmap_fn.1} parent=1 // pred_check_branch
      %133 = sbr.rel (0) target = $region21
    $region20: #{heatmap_fn.1} parent=1 // pred_region
      _
    $region21: #{heatmap_fn.1} parent=1 // pred_fallthru
      _
    // Predicated region
    $region22: #{heatmap_fn.1} parent=1 // pred_check
      _
    $region23: #{heatmap_fn.1} parent=1 // pred_check_branch
      %135 = sbr.rel (0) target = $region25
    $region24: #{heatmap_fn.1} parent=1 // pred_region
      _
    $region25: #{heatmap_fn.1} parent=1 // pred_fallthru
      _
    %136 = vsyncpa [#allocation3], 1
    %137 = vsyncpa [#allocation5], 1

</llo_original>
